<compile_context>
chip_gen: v7x
topology: tpu7x:2x2x1
jax: 0.10.0
libtpu: 0.0.40
codegen_flags: <defaults>
</compile_context>

<pallas_src>
import jax
import jax.numpy as jnp
from jax import lax
from jax.experimental import pallas as pl
from jax.experimental.pallas import tpu as pltpu
import numpy as np


def _round_down(n, m):
    return (n // m) * m


def _vmem_capacity_bytes():
    """Best-effort physical VMEM query; conservative (v7x-sized) fallback."""
    try:
        return int(pltpu.get_tpu_info().vmem_capacity_bytes)
    except Exception:
        return 64 * 1024 * 1024


# ---------------------------------------------------------------------------
# One-time parameter preparation (NOT per forward call)
# ---------------------------------------------------------------------------
def prepare_params(params, compute_dtype=jnp.bfloat16):
    """Cast / reshape parameters once.

    * w_lin stored in the compute dtype (bf16 halves weight HBM traffic; the
      kernel accumulates in f32 on the MXU regardless).
    * b_lin pre-reshaped to (1, C_out), kept f32 (added post-MXU).
    * adaLN weights stay f32; that GEMM is tiny and runs in plain XLA.
    """
    return {
        "w_lin": params["w_lin"].astype(compute_dtype),
        "b_lin": params["b_lin"].reshape(1, -1).astype(jnp.float32),
        "w_mod": params["w_mod"].astype(jnp.float32),
        "b_mod": params["b_mod"].astype(jnp.float32),
    }


# ---------------------------------------------------------------------------
# adaLN modulation: SiLU(c) @ W_mod + b_mod, repacked as (B, 2, H)
#   row 0 = shift, row 1 = 1 + scale  (lane-aligned for any H)
# Deliberately NOT a Pallas kernel: ~0.01% of FLOPs, MXU M-dim is only B, and
# holding the (H, 2H) weight un-tiled in VMEM was the main v7x VMEM risk.
# ---------------------------------------------------------------------------
def adaln_modulation(c, w_mod, b_mod):
    H = c.shape[-1]
    c32 = c.astype(jnp.float32)
    s = c32 * jax.nn.sigmoid(c32)                                  # SiLU
    mod = jnp.dot(s, w_mod, preferred_element_type=jnp.float32) + b_mod  # (B, 2H)
    shift = mod[:, :H]
    scale1 = 1.0 + mod[:, H:]
    return jnp.stack([shift, scale1], axis=1)                      # (B, 2, H) f32


# ---------------------------------------------------------------------------
# Kernel: LayerNorm (no affine, eps=1e-6) + adaLN modulate + final Linear
#   grid = (B, ceil(T / tT)); each program handles one (tT, H) token tile.
# ---------------------------------------------------------------------------
def final_kernel(x_ref, mod_ref, w_ref, b_ref, out_ref):
    x = x_ref[0].astype(jnp.float32)                    # (tT, H)

    # LayerNorm over H: two-pass stats in f32 (avoids catastrophic
    # cancellation when |mean| >> std).
    mean = jnp.mean(x, axis=-1, keepdims=True)
    xc = x - mean
    var = jnp.mean(xc * xc, axis=-1, keepdims=True)
    xn = xc * lax.rsqrt(var + 1e-6)

    # adaLN modulate; mod rows are already (shift, 1+scale).
    m = mod_ref[0].astype(jnp.float32)                  # (2, H)
    xm = xn * m[1:2, :] + m[0:1, :]                     # (tT, H)

    # Final projection: MXU operands in the weight dtype, f32 accumulation.
    w = w_ref[...]                                      # (H, C_out)
    out = jnp.dot(xm.astype(w.dtype), w, preferred_element_type=jnp.float32)
    out = out + b_ref[...]                              # (1, C_out) f32
    out_ref[0] = out.astype(out_ref.dtype)


def _resident_block_spec(shape, index_map):
    # Weight/bias blocks never change across the grid; single-buffer them to
    # save VMEM (matters on v7x's 64 MiB part). Fall back gracefully if
    # pipeline_mode is unavailable in this jax version.
    try:
        return pl.BlockSpec(shape, index_map, pipeline_mode=pl.Buffered(1))
    except TypeError:
        return pl.BlockSpec(shape, index_map)


def final_layer_forward(x, c, params, *, token_tile_bytes=None):
    """x: (B, T, H), c: (B, H) -> (B, T, C_out).  Works for f32 or bf16 x/w_lin."""
    B, T, H = x.shape
    C_out = params["w_lin"].shape[1]
    out_dtype = x.dtype
    x_item = jnp.dtype(x.dtype).itemsize
    w_item = jnp.dtype(params["w_lin"].dtype).itemsize
    out_item = jnp.dtype(out_dtype).itemsize

    # ---- adaLN modulation (plain XLA, fused in the jit) -> (B, 2, H) f32 ----
    mod = adaln_modulation(c, params["w_mod"], params["b_mod"])

    # ---- per-generation token tile: ~2 MiB on 64 MiB (v7x) parts, ~8 MiB on
    #      128 MiB (v5e/v6e) parts.  LayerNorm only reduces over H, so
    #      T-tiling is exact. ----
    vmem_cap = _vmem_capacity_bytes()
    if token_tile_bytes is None:
        token_tile_bytes = (2 << 20) if vmem_cap <= (72 << 20) else (8 << 20)
    tT = max(8, token_tile_bytes // (H * x_item))
    if tT >= T:
        tT = T
    else:
        tT = min(T, max(32, _round_down(tT, 32)))   # sublane/pack aligned (f32 & bf16)
    n_t = pl.cdiv(T, tT)

    # ---- VMEM budget derived from actual tile sizes (+ f32 temporaries) ----
    budget = (2 * tT * H * x_item                     # x tile, double-buffered
              + 2 * tT * C_out * out_item             # out tile, double-buffered
              + (H * C_out * w_item + C_out * 4)      # resident weight + bias
              + 2 * 2 * H * 4                         # modulation rows
              + 4 * tT * H * 4                        # f32 elementwise temporaries
              + (4 << 20))                            # headroom
    vmem_limit = int(min(max(budget, 16 << 20), int(0.85 * vmem_cap)))

    cost = pl.CostEstimate(
        flops=2 * B * T * H * C_out + 10 * B * T * H,
        transcendentals=B * T,                        # one rsqrt per token row
        bytes_accessed=(x.size * x_item + mod.size * 4
                        + H * C_out * w_item + C_out * 4
                        + B * T * C_out * out_item),
    )

    # Output is emitted UNPADDED (block last dim == C_out): masked stores are
    # free in this HBM-bound regime and the wrapper-side un-pad copy is gone.
    # TODO(synk): for C_out >= 512 add an N grid axis (256-wide tiles on
    # v6e/v7x, 128 on v5e) to bound per-step VMEM and fill the MXU width.
    out = pl.pallas_call(
        final_kernel,
        out_shape=jax.ShapeDtypeStruct((B, T, C_out), out_dtype),
        grid_spec=pl.GridSpec(
            grid=(B, n_t),
            in_specs=[
                pl.BlockSpec((1, tT, H), lambda b, t: (b, t, 0)),
                pl.BlockSpec((1, 2, H), lambda b, t: (b, 0, 0)),
                _resident_block_spec((H, C_out), lambda b, t: (0, 0)),
                _resident_block_spec((1, C_out), lambda b, t: (0, 0)),
            ],
            out_specs=pl.BlockSpec((1, tT, C_out), lambda b, t: (b, t, 0)),
        ),
        compiler_params=pltpu.CompilerParams(
            dimension_semantics=("parallel", "parallel"),
            vmem_limit_bytes=vmem_limit,
        ),
        cost_estimate=cost,
    )(x, mod, params["w_lin"], params["b_lin"])
    return out


# ---------------------------------------------------------------------------
# Deterministic parameter init (mirrors the nn.Module's shapes) + reference
# ---------------------------------------------------------------------------
def init_params(key, hidden_size, out_channels):
    k1, k2, k3, k4 = jax.random.split(key, 4)
    w_lin = jax.random.normal(k1, (hidden_size, out_channels), jnp.float32) * 0.02
    b_lin = jax.random.normal(k2, (out_channels,), jnp.float32) * 0.02
    w_mod = jax.random.normal(k3, (hidden_size, 2 * hidden_size), jnp.float32) * 0.02
    b_mod = jax.random.normal(k4, (2 * hidden_size,), jnp.float32) * 0.02
    return {"w_lin": w_lin, "b_lin": b_lin, "w_mod": w_mod, "b_mod": b_mod}


def reference_forward(x, c, params):
    H = x.shape[-1]
    xf = x.astype(jnp.float32)
    cf = c.astype(jnp.float32)
    s = cf * jax.nn.sigmoid(cf)
    mod = s @ params["w_mod"] + params["b_mod"]
    shift, scale = mod[:, :H], mod[:, H:]
    mean = jnp.mean(xf, axis=-1, keepdims=True)
    var = jnp.mean((xf - mean) ** 2, axis=-1, keepdims=True)
    xn = (xf - mean) / jnp.sqrt(var + 1e-6)
    xm = xn * (1 + scale[:, None, :]) + shift[:, None, :]
    return xm @ params["w_lin"] + params["b_lin"]


if __name__ == "__main__":
    B, T, H, C_OUT = 2, 16, 32, 8

    key = jax.random.PRNGKey(0)
    kx, kc, kp = jax.random.split(key, 3)
    x = jax.random.normal(kx, (B, T, H), jnp.float32)
    c = jax.random.normal(kc, (B, H), jnp.float32)
    raw_params = init_params(kp, H, C_OUT)
    ref = np.asarray(reference_forward(x, c, raw_params))

    fwd = jax.jit(final_layer_forward)

    # f32 path: tight correctness check.
    p32 = prepare_params(raw_params, compute_dtype=jnp.float32)
    out32 = jax.block_until_ready(fwd(x, c, p32))
    np.testing.assert_allclose(np.asarray(out32), ref, rtol=1e-4, atol=1e-5)

    # bf16 path (production config: x / w_lin / out in bf16, f32 stats/accum).
    pbf = prepare_params(raw_params, compute_dtype=jnp.bfloat16)
    outbf = jax.block_until_ready(fwd(x.astype(jnp.bfloat16), c, pbf))
    np.testing.assert_allclose(np.asarray(outbf.astype(jnp.float32)), ref,
                               rtol=5e-2, atol=5e-2)

    print("KERNEL_OK")
</pallas_src>

<mosaic_0001>
module attributes {stable_mosaic.version = 11 : i64} {
  func.func @final_kernel(%arg0: i32, %arg1: i32, %arg2: memref<1x16x32xf32, #tpu.memory_space<vmem>>, %arg3: memref<1x2x32xf32, #tpu.memory_space<vmem>>, %arg4: memref<32x8xf32, #tpu.memory_space<vmem>>, %arg5: memref<1x8xf32, #tpu.memory_space<vmem>>, %arg6: memref<1x16x8xf32, #tpu.memory_space<vmem>>) attributes {dimension_semantics = [#tpu.dimension_semantics<parallel>, #tpu.dimension_semantics<parallel>], iteration_bounds = array<i64: 2, 1>, scalar_prefetch = 0 : i64, scratch_operands = 0 : i64, tpu.core_type = #tpu.core_type<tc>, window_params = [{transform_indices = @transform_0, window_bounds = array<i64: 1, 16, 32>}, {transform_indices = @transform_1, window_bounds = array<i64: 1, 2, 32>}, {pipeline_mode = #tpu.pipeline_mode<synchronous>, transform_indices = @transform_2, window_bounds = array<i64: 32, 8>}, {pipeline_mode = #tpu.pipeline_mode<synchronous>, transform_indices = @transform_3, window_bounds = array<i64: 1, 8>}, {transform_indices = @transform_4, window_bounds = array<i64: 1, 16, 8>}]} {
    %c0 = arith.constant 0 : index
    %c0_0 = arith.constant 0 : index
    %c0_1 = arith.constant 0 : index
    %0 = vector.load %arg2[%c0, %c0_0, %c0_1] : memref<1x16x32xf32, #tpu.memory_space<vmem>>, vector<1x16x32xf32>
    %1 = vector.shape_cast %0 : vector<1x16x32xf32> to vector<16x32xf32>
    %cst = arith.constant dense<0.000000e+00> : vector<16xf32>
    %2 = vector.multi_reduction <add>, %1, %cst [1] : vector<16x32xf32> to vector<16xf32>
    %3 = vector.shape_cast %2 : vector<16xf32> to vector<16x1xf32>
    %cst_2 = arith.constant 3.200000e+01 : f32
    %4 = vector.broadcast %cst_2 : f32 to vector<16x1xf32>
    %5 = arith.divf %3, %4 : vector<16x1xf32>
    %6 = vector.broadcast %5 : vector<16x1xf32> to vector<16x32xf32>
    %7 = arith.subf %1, %6 : vector<16x32xf32>
    %8 = arith.mulf %7, %7 : vector<16x32xf32>
    %cst_3 = arith.constant dense<0.000000e+00> : vector<16xf32>
    %9 = vector.multi_reduction <add>, %8, %cst_3 [1] : vector<16x32xf32> to vector<16xf32>
    %10 = vector.shape_cast %9 : vector<16xf32> to vector<16x1xf32>
    %cst_4 = arith.constant 3.200000e+01 : f32
    %11 = vector.broadcast %cst_4 : f32 to vector<16x1xf32>
    %12 = arith.divf %10, %11 : vector<16x1xf32>
    %cst_5 = arith.constant 9.99999997E-7 : f32
    %13 = vector.broadcast %cst_5 : f32 to vector<16x1xf32>
    %14 = arith.addf %12, %13 : vector<16x1xf32>
    %15 = math.rsqrt %14 : vector<16x1xf32>
    %16 = vector.broadcast %15 : vector<16x1xf32> to vector<16x32xf32>
    %17 = arith.mulf %7, %16 : vector<16x32xf32>
    %c0_6 = arith.constant 0 : index
    %c0_7 = arith.constant 0 : index
    %c0_8 = arith.constant 0 : index
    %18 = vector.load %arg3[%c0_6, %c0_7, %c0_8] : memref<1x2x32xf32, #tpu.memory_space<vmem>>, vector<1x2x32xf32>
    %19 = vector.shape_cast %18 : vector<1x2x32xf32> to vector<2x32xf32>
    %20 = vector.extract_strided_slice %19 {offsets = [1, 0], sizes = [1, 32], strides = [1, 1]} : vector<2x32xf32> to vector<1x32xf32>
    %21 = vector.broadcast %20 : vector<1x32xf32> to vector<16x32xf32>
    %22 = arith.mulf %17, %21 : vector<16x32xf32>
    %23 = vector.extract_strided_slice %19 {offsets = [0, 0], sizes = [1, 32], strides = [1, 1]} : vector<2x32xf32> to vector<1x32xf32>
    %24 = vector.broadcast %23 : vector<1x32xf32> to vector<16x32xf32>
    %25 = arith.addf %22, %24 : vector<16x32xf32>
    %c0_9 = arith.constant 0 : index
    %c0_10 = arith.constant 0 : index
    %26 = vector.load %arg4[%c0_9, %c0_10] : memref<32x8xf32, #tpu.memory_space<vmem>>, vector<32x8xf32>
    %cst_11 = arith.constant dense<0.000000e+00> : vector<16x8xf32>
    %27 = tpu.matmul %25, %26, %cst_11 {dimension_numbers = #tpu.dot_dimension_numbers<[1], [0], [0], [1], [0, 0, 1, 1], [], []>} : vector<16x32xf32>, vector<32x8xf32>, vector<16x8xf32> -> vector<16x8xf32>
    %c0_12 = arith.constant 0 : index
    %c0_13 = arith.constant 0 : index
    %28 = vector.load %arg5[%c0_12, %c0_13] : memref<1x8xf32, #tpu.memory_space<vmem>>, vector<1x8xf32>
    %29 = vector.broadcast %28 : vector<1x8xf32> to vector<16x8xf32>
    %30 = arith.addf %27, %29 : vector<16x8xf32>
    %c0_14 = arith.constant 0 : index
    %c0_15 = arith.constant 0 : index
    %c0_16 = arith.constant 0 : index
    %31 = vector.load %arg6[%c0_14, %c0_15, %c0_16] : memref<1x16x8xf32, #tpu.memory_space<vmem>>, vector<1x16x8xf32>
    %32 = vector.shape_cast %31 : vector<1x16x8xf32> to vector<16x8xf32>
    %33 = vector.shape_cast %30 : vector<16x8xf32> to vector<1x16x8xf32>
    tpu.vector_store %arg6[%c0_14, %c0_15, %c0_16], %33 {strides = array<i32>} : memref<1x16x8xf32, #tpu.memory_space<vmem>>, vector<1x16x8xf32>,
    return
  }
  func.func @transform_0(%arg0: i32, %arg1: i32) -> (i32, i32, i32) {
    %c0_i32 = arith.constant 0 : i32
    %c0_i32_0 = arith.constant 0 : i32
    return %arg0, %arg1, %c0_i32 : i32, i32, i32
  }
  func.func @transform_1(%arg0: i32, %arg1: i32) -> (i32, i32, i32) {
    %c0_i32 = arith.constant 0 : i32
    %c0_i32_0 = arith.constant 0 : i32
    %c0_i32_1 = arith.constant 0 : i32
    return %arg0, %c0_i32, %c0_i32_0 : i32, i32, i32
  }
  func.func @transform_2(%arg0: i32, %arg1: i32) -> (i32, i32) {
    %c0_i32 = arith.constant 0 : i32
    %c0_i32_0 = arith.constant 0 : i32
    %c0_i32_1 = arith.constant 0 : i32
    return %c0_i32, %c0_i32_0 : i32, i32
  }
  func.func @transform_3(%arg0: i32, %arg1: i32) -> (i32, i32) {
    %c0_i32 = arith.constant 0 : i32
    %c0_i32_0 = arith.constant 0 : i32
    %c0_i32_1 = arith.constant 0 : i32
    return %c0_i32, %c0_i32_0 : i32, i32
  }
  func.func @transform_4(%arg0: i32, %arg1: i32) -> (i32, i32, i32) {
    %c0_i32 = arith.constant 0 : i32
    %c0_i32_0 = arith.constant 0 : i32
    return %arg0, %arg1, %c0_i32 : i32, i32, i32
  }
}

</mosaic_0001>

<llo_original>
// kernel: final_layer_forward.1
$region0: #{final_layer_forward.1}
  #allocation0 [shape = 'u32[]', space=smem, size = 0x4, offset = 0x4, fixed_abs, tag = 'smem constant byte address 0x4 - core index']
  #allocation1 [shape = 'u32[144,128]{1,0:T(1,128)}', space=vmem, size = 0x12000, scoped, tag = 'internal scratch']
  %s0 = inlined_call_operand.vmem [shape: f32[2,16,32], index: 0, kind: input, shape index: {}]
  %s1 = inlined_call_operand.vmem [shape: f32[2,2,32], index: 1, kind: input, shape index: {}]
  %s2 = inlined_call_operand.vmem [shape: f32[32,8], index: 2, kind: input, shape index: {}]
  %s3 = inlined_call_operand.vmem [shape: f32[1,8], index: 3, kind: input, shape index: {}]
  %s4 = inlined_call_operand.vmem [shape: f32[2,16,8], index: 4, kind: output, shape index: {}]
  %s5 = sld [smem:[#allocation0]]
  $region49: #{final_layer_forward.1} parent=0
    _
  %s7 = ssub.s32 1, %s5
  %s8 = scalar_select 0, %s7, %s5
  loop: start=0, step=1, limit=4
  $region2: #{final_layer_forward.1} parent=0 // loop_pre_header
    _
  $region3: #{final_layer_forward.1} parent=0 // loop_header
    %s10 = sphi 0, %s14
    %p11 = scmp.ge.s32.totalorder %s10, 4
    %s17 = sphi 0, %s29
    %s18 = sphi 0, %s25
    %s19 = sphi 0, %s17
    %s20 = sphi 0, %s18
    %s21 = sphi 0, %s19
    %s22 = sphi 0, %s20
    %s34 = sphi 0, %s36
    %s37 = sphi 0, %s34
    %s38 = sphi 0, %s37
    %s54 = sphi 0, %s38
    %s60 = sphi 0, %s62
    %s63 = sphi 0, %s60
    %s64 = sphi 0, %s63
    %s80 = sphi 0, %s64
    %s84 = sphi 0, %s84
    %s86 = sphi 0, %s84
    %s87 = sphi 0, %s86
    %s101 = sphi 0, %s87
    %s105 = sphi 0, %s105
    %s107 = sphi 0, %s105
    %s108 = sphi 0, %s107
    %s122 = sphi 0, %s108
    %s130 = sphi 0, %s132
    %s133 = sphi 0, %s130
    %s134 = sphi 0, %s133
    %s150 = sphi 0, %s134
  $region4: #{final_layer_forward.1} parent=0 // loop_header_branch
    %13 = sbr.rel (%p11) target = $region8
  $region5: #{final_layer_forward.1} parent=0 // loop_body
    %s15 = ssub.s32 %s10, 1
    %s16 = ssub.s32 %s10, 2
    %s23 = sadd.s32 1, %s18
    %p24 = scmp.ge.s32.totalorder %s23, 1
    %s25 = scalar_select %p24, 0, %s23
    %s26 = sadd.s32 1, %s17
    %s27 = scalar_select %p24, %s26, %s17
    %p28 = scmp.ge.s32.totalorder %s27, 2
    %s29 = scalar_select %p28, 0, %s27
    %s30 = ssub.s32 %s17, %s29
    %s31 = ssub.s32 %s18, %s25
    %s32 = sor.u32 %s30, %s31
    %p33 = scmp.eq.s32.totalorder %s32, 0
    %s35 = sadd.s32 %s34, 1
    %s36 = scalar_select %p33, %s34, %s35
    %p39 = pneg %p33
    %p40 = scmp.eq.s32.totalorder %s10, 1
    %p41 = por %p39, %p40
    %p42 = scmp.ne.s32.totalorder %s34, %s37
    %p43 = scmp.eq.s32.totalorder %s10, 0
    %p44 = por %p42, %p43
    %p45 = scmp.ne.s32.totalorder %s34, %s37
    %p46 = scmp.eq.s32.totalorder %s15, 1
    %p47 = por %p45, %p46
    %p48 = scmp.ne.s32.totalorder %s37, %s38
    %p49 = scmp.eq.s32.totalorder %s15, 0
    %p50 = por %p48, %p49
    %p51 = scmp.ne.s32.totalorder %s37, %s38
    %p52 = scmp.eq.s32.totalorder %s16, 1
    %p53 = por %p51, %p52
    %p55 = scmp.ne.s32.totalorder %s38, %s54
    %p56 = scmp.eq.s32.totalorder %s16, 0
    %p57 = por %p55, %p56
    %s58 = ssub.s32 %s17, %s29
    %p59 = scmp.eq.s32.totalorder %s58, 0
    %s61 = sadd.s32 %s60, 1
    %s62 = scalar_select %p59, %s60, %s61
    %p65 = pneg %p59
    %p66 = scmp.eq.s32.totalorder %s10, 1
    %p67 = por %p65, %p66
    %p68 = scmp.ne.s32.totalorder %s60, %s63
    %p69 = scmp.eq.s32.totalorder %s10, 0
    %p70 = por %p68, %p69
    %p71 = scmp.ne.s32.totalorder %s60, %s63
    %p72 = scmp.eq.s32.totalorder %s15, 1
    %p73 = por %p71, %p72
    %p74 = scmp.ne.s32.totalorder %s63, %s64
    %p75 = scmp.eq.s32.totalorder %s15, 0
    %p76 = por %p74, %p75
    %p77 = scmp.ne.s32.totalorder %s63, %s64
    %p78 = scmp.eq.s32.totalorder %s16, 1
    %p79 = por %p77, %p78
    %p81 = scmp.ne.s32.totalorder %s64, %s80
    %p82 = scmp.eq.s32.totalorder %s16, 0
    %p83 = por %p81, %p82
    %s85 = sadd.s32 %s84, 1
    %p88 = scmp.eq.s32.totalorder %s10, 1
    %p89 = scmp.ne.s32.totalorder %s84, %s86
    %p90 = scmp.eq.s32.totalorder %s10, 0
    %p91 = por %p89, %p90
    %p92 = scmp.ne.s32.totalorder %s84, %s86
    %p93 = scmp.eq.s32.totalorder %s15, 1
    %p94 = por %p92, %p93
    %p95 = scmp.ne.s32.totalorder %s86, %s87
    %p96 = scmp.eq.s32.totalorder %s15, 0
    %p97 = por %p95, %p96
    %p98 = scmp.ne.s32.totalorder %s86, %s87
    %p99 = scmp.eq.s32.totalorder %s16, 1
    %p100 = por %p98, %p99
    %p102 = scmp.ne.s32.totalorder %s87, %s101
    %p103 = scmp.eq.s32.totalorder %s16, 0
    %p104 = por %p102, %p103
    %s106 = sadd.s32 %s105, 1
    %p109 = scmp.eq.s32.totalorder %s10, 1
    %p110 = scmp.ne.s32.totalorder %s105, %s107
    %p111 = scmp.eq.s32.totalorder %s10, 0
    %p112 = por %p110, %p111
    %p113 = scmp.ne.s32.totalorder %s105, %s107
    %p114 = scmp.eq.s32.totalorder %s15, 1
    %p115 = por %p113, %p114
    %p116 = scmp.ne.s32.totalorder %s107, %s108
    %p117 = scmp.eq.s32.totalorder %s15, 0
    %p118 = por %p116, %p117
    %p119 = scmp.ne.s32.totalorder %s107, %s108
    %p120 = scmp.eq.s32.totalorder %s16, 1
    %p121 = por %p119, %p120
    %p123 = scmp.ne.s32.totalorder %s108, %s122
    %p124 = scmp.eq.s32.totalorder %s16, 0
    %p125 = por %p123, %p124
    %s126 = ssub.s32 %s17, %s29
    %s127 = ssub.s32 %s18, %s25
    %s128 = sor.u32 %s126, %s127
    %p129 = scmp.eq.s32.totalorder %s128, 0
    %s131 = sadd.s32 %s130, 1
    %s132 = scalar_select %p129, %s130, %s131
    %p135 = pneg %p129
    %p136 = scmp.eq.s32.totalorder %s10, 1
    %p137 = por %p135, %p136
    %p138 = scmp.ne.s32.totalorder %s130, %s133
    %p139 = scmp.eq.s32.totalorder %s10, 0
    %p140 = por %p138, %p139
    %p141 = scmp.ne.s32.totalorder %s130, %s133
    %p142 = scmp.eq.s32.totalorder %s15, 1
    %p143 = por %p141, %p142
    %p144 = scmp.ne.s32.totalorder %s133, %s134
    %p145 = scmp.eq.s32.totalorder %s15, 0
    %p146 = por %p144, %p145
    %p147 = scmp.ne.s32.totalorder %s133, %s134
    %p148 = scmp.eq.s32.totalorder %s16, 1
    %p149 = por %p147, %p148
    %p151 = scmp.ne.s32.totalorder %s134, %s150
    %p152 = scmp.eq.s32.totalorder %s16, 0
    %p153 = por %p151, %p152
    %p154 = scmp.le.s32.totalorder 1, %s10
    %p155 = scmp.lt.s32.totalorder %s10, 3
    %p156 = pnand %p154, %p155
    %p157 = pneg %p156
    // Predicated region
    $region9: #{final_layer_forward.1} parent=5 // pred_check
      _
    $region10: #{final_layer_forward.1} parent=5 // pred_check_branch
      %159 = sbr.rel (%p156) target = $region12
    $region11: #{final_layer_forward.1} parent=5 // pred_region
      %s160 = ssub.s32 %s10, 1
      // Predicated region
      $region13: #{final_layer_forward.1} parent=11 // pred_check
        %p161 = pneg %p97
      $region14: #{final_layer_forward.1} parent=11 // pred_check_branch
        %163 = sbr.rel (%p161) target = $region16
      $region15: #{final_layer_forward.1} parent=11 // pred_region
        _
      $region16: #{final_layer_forward.1} parent=11 // pred_fallthru
        _
      // Predicated region
      $region17: #{final_layer_forward.1} parent=11 // pred_check
        %p164 = pneg %p118
      $region18: #{final_layer_forward.1} parent=11 // pred_check_branch
        %166 = sbr.rel (%p164) target = $region20
      $region19: #{final_layer_forward.1} parent=11 // pred_region
        _
      $region20: #{final_layer_forward.1} parent=11 // pred_fallthru
        _
    $region12: #{final_layer_forward.1} parent=5 // pred_fallthru
      _
    %p167 = scmp.lt.s32.totalorder %s10, 2
    // Predicated region
    $region21: #{final_layer_forward.1} parent=5 // pred_check
      %p168 = pneg %p167
    $region22: #{final_layer_forward.1} parent=5 // pred_check_branch
      %170 = sbr.rel (%p168) target = $region24
    $region23: #{final_layer_forward.1} parent=5 // pred_region
      // Predicated region
      $region25: #{final_layer_forward.1} parent=23 // pred_check
        %p171 = pneg %p44
      $region26: #{final_layer_forward.1} parent=23 // pred_check_branch
        %173 = sbr.rel (%p171) target = $region28
      $region27: #{final_layer_forward.1} parent=23 // pred_region
        %s174 = smul.u32 2, %s18
        %p175 = scmp.lt.s32.totalorder %s17, 1
        %s176 = scalar_select %p175, %s17, 1
        %p177 = scmp.lt.s32.totalorder %s174, 1
        %s178 = scalar_select %p177, %s174, 1
        %s179 = smul.addr %s176, 2
        %s180 = sadd.s32 %s178, %s179
        %s181 = smul.addr %s180, 8
        %s182 = scalar_lea.vmem %s0, %s181
        %s183 = smul.u32 2, %s18
      $region28: #{final_layer_forward.1} parent=23 // pred_fallthru
        _
      // Predicated region
      $region29: #{final_layer_forward.1} parent=23 // pred_check
        %p184 = pneg %p70
      $region30: #{final_layer_forward.1} parent=23 // pred_check_branch
        %186 = sbr.rel (%p184) target = $region32
      $region31: #{final_layer_forward.1} parent=23 // pred_region
        %p187 = scmp.lt.s32.totalorder %s17, 1
        %s188 = scalar_select %p187, %s17, 1
        %s189 = smul.addr %s188, 2
        %s190 = scalar_lea.vmem %s1, %s189
      $region32: #{final_layer_forward.1} parent=23 // pred_fallthru
        _
    $region24: #{final_layer_forward.1} parent=5 // pred_fallthru
      _
    %p191 = scmp.le.s32.totalorder 1, %s10
    %p192 = scmp.lt.s32.totalorder %s10, 3
    %p193 = pnand %p191, %p192
    %p194 = pneg %p193
    // Predicated region
    $region33: #{final_layer_forward.1} parent=5 // pred_check
      _
    $region34: #{final_layer_forward.1} parent=5 // pred_check_branch
      %196 = sbr.rel (%p193) target = $region36
    $region35: #{final_layer_forward.1} parent=5 // pred_region
      %s197 = ssub.s32 %s10, 1
      %s198 = smul.u32 2, %s20
      %p199 = scmp.lt.s32.totalorder %s19, 1
      %s200 = scalar_select %p199, %s19, 1
      %p201 = scmp.lt.s32.totalorder %s198, 1
      %s202 = scalar_select %p201, %s198, 1
      %s203 = smul.addr %s200, 2
      %s204 = sadd.s32 %s202, %s203
      %s205 = smul.addr %s204, 8
      %s206 = scalar_lea.vmem %s0, %s205
      %p207 = pneg %p50
      %p208 = pneg %p47
      %p209 = scmp.lt.s32.totalorder %s19, 1
      %s210 = scalar_select %p209, %s19, 1
      %s211 = smul.addr %s210, 2
      %s212 = scalar_lea.vmem %s1, %s211
      %p213 = pneg %p76
      %p214 = pneg %p73
      %p215 = pneg %p97
      %p216 = pneg %p94
      %p217 = pneg %p118
      %p218 = pneg %p115
      %p219 = pneg %p146
      %p220 = pneg %p143
      %s221 = smul.u32 2, %s20
      %p222 = scmp.lt.s32.totalorder %s19, 1
      %s223 = scalar_select %p222, %s19, 1
      %p224 = scmp.lt.s32.totalorder %s221, 1
      %s225 = scalar_select %p224, %s221, 1
      %s226 = smul.addr %s223, 2
      %s227 = sadd.s32 %s225, %s226
      %s228 = smul.addr %s227, 8
      %s229 = scalar_lea.vmem %s4, %s228
      %s230 = smul.u32 2, %s20
      %p231 = scmp.lt.s32.totalorder %s19, 1
      %s232 = scalar_select %p231, %s19, 1
      %p233 = scmp.lt.s32.totalorder %s230, 1
      %s234 = scalar_select %p233, %s230, 1
      %s235 = smul.addr %s232, 2
      %s236 = sadd.s32 %s234, %s235
      %s237 = smul.addr %s236, 8
      %s238 = scalar_lea.vmem %s0, %s237
      %s239 = smul.u32 2, %s20
      %p240 = scmp.lt.s32.totalorder %s19, 1
      %s241 = scalar_select %p240, %s19, 1
      %s242 = smul.addr %s241, 2
      %s243 = scalar_lea.vmem %s1, %s242
      %s244 = smul.u32 2, %s20
      %p245 = scmp.lt.s32.totalorder %s19, 1
      %s246 = scalar_select %p245, %s19, 1
      %p247 = scmp.lt.s32.totalorder %s244, 1
      %s248 = scalar_select %p247, %s244, 1
      %s249 = smul.addr %s246, 2
      %s250 = sadd.s32 %s248, %s249
      %s251 = smul.addr %s250, 8
      %s252 = scalar_lea.vmem %s4, %s251
      %s253 = smul.u32 2, %s20
      %v254 = vld [vmem:[%s238] sm:$0xff]
      %v255 = vld [vmem:[%s238 + $0x8] sm:$0xff]
      %vm256 = vcmask 261120
      %v257 = vsel %vm256, %v254, 0.0
      %258 = vadd.xlane.f32.xlu0 %v257
      %v259 = vpop.xlane.xlu0 %258
      %v260 = vsel %vm256, %v255, 0.0
      %261 = vadd.xlane.f32.xlu0 %v260
      %v262 = vpop.xlane.xlu0 %261
      %v263 = vrcp.pop 32.0
      %v264 = vmul.f32 %v259, %v263
      %v265 = vmul.f32 %v262, %v263
      %v266 = vsub.f32 %v254, %v264
      %v267 = vsub.f32 %v255, %v265
      %v268 = vmul.f32 %v266, %v266
      %v269 = vmul.f32 %v267, %v267
      %v270 = vsel %vm256, %v268, 0.0
      %271 = vadd.xlane.f32.xlu0 %v270
      %v272 = vpop.xlane.xlu0 %271
      %v273 = vsel %vm256, %v269, 0.0
      %274 = vadd.xlane.f32.xlu0 %v273
      %v275 = vpop.xlane.xlu0 %274
      %v276 = vmul.f32 %v272, %v263
      %v277 = vmul.f32 %v275, %v263
      %v278 = vadd.f32 %v276, 1e-06
      %v279 = vadd.f32 %v277, 1e-06
      %v280 = vrsqrt.pop %v278
      %v281 = vrsqrt.pop %v279
      %v282 = vmul.f32 %v266, %v280
      %v283 = vmul.f32 %v267, %v281
      %v284 = vld [vmem:[%s243] sm:$0x3]
      %v285 = vlaneseq
      %v286 = vshrl.u32 %v285, 7
      %v287 = vsub.s32 1, %v286
      %v288 = vrot.slane %v284, %v287
      %v289 = vmul.f32 %v282, %v288
      %v290 = vmul.f32 %v283, %v288
      %v291 = vlaneseq
      %v292 = vshrl.u32 %v291, 7
      %v293 = vsub.s32 0, %v292
      %v294 = vrot.slane %v284, %v293
      %v295 = vadd.f32 %v289, %v294
      %v296 = vadd.f32 %v290, %v294
      %v297 = vld [vmem:[%s2] sm:$0xff]
      %v298 = vld [vmem:[%s2 + $0x8] sm:$0xff]
      %v299 = vld [vmem:[%s2 + $0x10] sm:$0xff]
      %v300 = vld [vmem:[%s2 + $0x18] sm:$0xff]
      %v301 = vld [vmem:[%s3] sm:$0x1]
      %v303 = vlaneseq
      %v304 = vshrl.u32 %v303, 7
      %v305 = vsub.s32 0, %v304
      %v306 = vrot.slane %v301, %v305
      %v309 = vsel %vm256, %v295, 0
      %v312 = vsel %vm256, %v296, 0
      %314 = vmatprep.subr.mxu0 0.0
      %315 = vmatpush1.msra.mxu0 %v297
      %316 = vmatprep.subr.mxu0 0.0
      %317 = vmatpush1.msra.mxu0 %v298
      %318 = vmatprep.subr.mxu0 0.0
      %319 = vmatpush1.msra.mxu0 %v299
      %320 = vmatprep.subr.mxu0 0.0
      %321 = vmatpush1.msra.mxu0 %v300
      %322 = vmatprep.subr.mxu0 0.0
      %323 = vmatpush1.msra.mxu0 0.0
      %324 = vmatprep.subr.mxu0 0.0
      %325 = vmatpush1.msra.mxu0 0.0
      %326 = vmatprep.subr.mxu0 0.0
      %327 = vmatpush1.msra.mxu0 0.0
      %328 = vmatprep.subr.mxu0 0.0
      %329 = vmatpush1.msra.mxu0 0.0
      %330 = vmatprep.subr.mxu0 0.0
      %331 = vmatpush1.msra.mxu0 0.0
      %332 = vmatprep.subr.mxu0 0.0
      %333 = vmatpush1.msra.mxu0 0.0
      %334 = vmatprep.subr.mxu0 0.0
      %335 = vmatpush1.msra.mxu0 0.0
      %336 = vmatprep.subr.mxu0 0.0
      %337 = vmatpush1.msra.mxu0 0.0
      %338 = vmatprep.subr.mxu0 0.0
      %339 = vmatpush1.msra.mxu0 0.0
      %340 = vmatprep.subr.mxu0 0.0
      %341 = vmatpush1.msra.mxu0 0.0
      %342 = vmatprep.subr.mxu0 0.0
      %343 = vmatpush1.msra.mxu0 0.0
      %344 = vmatprep.subr.mxu0 0.0
      %345 = vmatpush1.msra.mxu0 0.0
      %346 = vmatprep.subr.mxu0 0.0
      %347 = vmatpush1.msra.mxu0 0.0
      %348 = vmatprep.subr.mxu0 0.0
      %349 = vmatpush1.msra.mxu0 0.0
      %350 = vmatprep.subr.mxu0 0.0
      %351 = vmatpush1.msra.mxu0 0.0
      %352 = vmatprep.subr.mxu0 0.0
      %353 = vmatpush1.msra.mxu0 0.0
      %354 = vmatprep.subr.mxu0 0.0
      %355 = vmatpush1.msra.mxu0 0.0
      %356 = vmatprep.subr.mxu0 0.0
      %357 = vmatpush1.msra.mxu0 0.0
      %358 = vmatprep.subr.mxu0 0.0
      %359 = vmatpush1.msra.mxu0 0.0
      %360 = vmatprep.subr.mxu0 0.0
      %361 = vmatpush1.msra.mxu0 0.0
      %362 = vmatprep.subr.mxu0 0.0
      %363 = vmatpush1.msra.mxu0 0.0
      %364 = vmatprep.subr.mxu0 0.0
      %365 = vmatpush1.msra.mxu0 0.0
      %366 = vmatprep.subr.mxu0 0.0
      %367 = vmatpush1.msra.mxu0 0.0
      %368 = vmatprep.subr.mxu0 0.0
      %369 = vmatpush1.msra.mxu0 0.0
      %370 = vmatprep.subr.mxu0 0.0
      %371 = vmatpush1.msra.mxu0 0.0
      %372 = vmatprep.subr.mxu0 0.0
      %373 = vmatpush1.msra.mxu0 0.0
      %374 = vmatprep.subr.mxu0 0.0
      %375 = vmatpush1.msra.mxu0 0.0
      %376 = vmatprep.subr.mxu0 0.0
      %377 = vmatpush1.msra.mxu0 0.0
      %378 = vmatprep.mubr.f32.mxu0 0.0
      %379 = vmatmul.mubr.f32.gmra.mrb[0].mxu0 %v309
      %v380 = vpop.f32.mrb[0].mxu0
      %v381 = vadd.f32 %v306, %v380
      %v382 = vpop.f32.mrb[0].mxu0
      %383 = vmatprep.mubr.f32.mxu0 0.0
      %384 = vmatmul.mubr.f32.gmra.mrb[0].mxu0 %v312
      %v385 = vpop.f32.mrb[0].mxu0
      %v386 = vadd.f32 %v306, %v385
      %v387 = vpop.f32.mrb[0].mxu0
      %388 = vdwg.mxu0
      %vm389 = vcmask 64512
      %390 = vst.msk [vmem:[%s252] sm:$0xff] %vm389, %v381
      %391 = vst.msk [vmem:[%s252 + $0x8] sm:$0xff] %vm389, %v386
      %s392 = smul.u32 2, %s20
      %p393 = scmp.lt.s32.totalorder %s19, 1
      %s394 = scalar_select %p393, %s19, 1
      %p395 = scmp.lt.s32.totalorder %s392, 1
      %s396 = scalar_select %p395, %s392, 1
      %s397 = smul.addr %s394, 2
      %s398 = sadd.s32 %s396, %s397
      %s399 = smul.addr %s398, 8
      %s400 = scalar_lea.vmem %s4, %s399
      // Predicated region
      $region37: #{final_layer_forward.1} parent=35 // pred_check
        %p401 = pneg %p143
      $region38: #{final_layer_forward.1} parent=35 // pred_check_branch
        %403 = sbr.rel (%p401) target = $region40
      $region39: #{final_layer_forward.1} parent=35 // pred_region
        %s404 = smul.u32 2, %s20
      $region40: #{final_layer_forward.1} parent=35 // pred_fallthru
        _
    $region36: #{final_layer_forward.1} parent=5 // pred_fallthru
      _
    %p405 = scmp.le.s32.totalorder 2, %s10
    // Predicated region
    $region41: #{final_layer_forward.1} parent=5 // pred_check
      %p406 = pneg %p405
    $region42: #{final_layer_forward.1} parent=5 // pred_check_branch
      %408 = sbr.rel (%p406) target = $region44
    $region43: #{final_layer_forward.1} parent=5 // pred_region
      %s409 = ssub.s32 %s10, 2
      // Predicated region
      $region45: #{final_layer_forward.1} parent=43 // pred_check
        %p410 = pneg %p149
      $region46: #{final_layer_forward.1} parent=43 // pred_check_branch
        %412 = sbr.rel (%p410) target = $region48
      $region47: #{final_layer_forward.1} parent=43 // pred_region
        %s413 = smul.u32 2, %s22
        %p414 = scmp.lt.s32.totalorder %s21, 1
        %s415 = scalar_select %p414, %s21, 1
        %p416 = scmp.lt.s32.totalorder %s413, 1
        %s417 = scalar_select %p416, %s413, 1
        %s418 = smul.addr %s415, 2
        %s419 = sadd.s32 %s417, %s418
        %s420 = smul.addr %s419, 8
        %s421 = scalar_lea.vmem %s4, %s420
      $region48: #{final_layer_forward.1} parent=43 // pred_fallthru
        _
    $region44: #{final_layer_forward.1} parent=5 // pred_fallthru
      _
  $region6: #{final_layer_forward.1} parent=0 // loop_footer
    %s14 = sadd.s32 1, %s10
  $region7: #{final_layer_forward.1} parent=0 // loop_footer_branch
    %9 = sbr.rel target = $region3
  $region8: #{final_layer_forward.1} parent=0 // loop_exit
    _

</llo_original>
